<compile_context>
chip_gen: v5e
topology: v5e:2x2
jax: 0.10.0
libtpu: 0.0.40
codegen_flags: <defaults>
</compile_context>

<pallas_src>
import jax
import jax.numpy as jnp
from jax.experimental import pallas as pl
from jax.experimental.pallas import tpu as pltpu

# ---------------------------------------------------------------------------
# Layout / tiling constants
# ---------------------------------------------------------------------------
PTS_PER_ROW = 128                       # points per 128-lane group
LANE_W = 3 * PTS_PER_ROW                # 384 interleaved (x,y,z) values
MAX_ROWS_PER_CHUNK = 32                 # 32*128 = 4096 points / chunk / batch row
W_MAX = MAX_ROWS_PER_CHUNK * LANE_W     # 12288 lanes (~12.6 MiB block at TB=256)
MAX_TB = 256                            # max batch rows per tile
VMEM_LIMIT = 48 * 1024 * 1024           # safe on v5e/v6e (128 MiB) and v7x (64 MiB)


def _round_up(v, m):
    return ((v + m - 1) // m) * m


def make_mlp2_kernel(chunk_w):
    """chunk_w: static lane width of each x chunk (multiple of 3)."""

    def kernel(lim_ref, inv_ref,                      # SMEM scalar prefetch
               x_ref, w0_ref, b0_ref, w1_ref, b1_ref,
               w2_ref, b2_ref, w3_ref, b3_ref,        # inputs
               out_ref,                               # output
               acc_ref):                              # VMEM scratch
        k = pl.program_id(1)
        last = pl.num_programs(1) - 1

        @pl.when(k == 0)
        def _():
            acc_ref[...] = jnp.zeros_like(acc_ref)

        # Hot loop: pure VALU elementwise accumulate (no XLU sublane reduce),
        # so the kernel stays DMA/HBM bound on every generation incl. v7x.
        @pl.when(k < last)
        def _():
            acc_ref[...] += x_ref[...]

        @pl.when(k == last)
        def _():
            # Ragged tail of the flattened (point, coord) axis: lanes at or
            # beyond 3*N in this chunk hold unspecified data -> zero-mask them.
            limit = lim_ref[0] - k * chunk_w          # valid lanes in this chunk
            lane = jax.lax.broadcasted_iota(jnp.int32, (1, chunk_w), 1)
            acc_ref[...] = acc_ref[...] + jnp.where(lane < limit, x_ref[...], 0.0)

            # acc holds interleaved per-coordinate sums over all points;
            # w0big[r] = w0[r % 3], so acc @ w0big == (sum over points of x) @ w0.
            z = jnp.dot(acc_ref[...], w0_ref[...],
                        preferred_element_type=jnp.float32)
            z = z * inv_ref[0] + b0_ref[...]          # mean + bias (after mean == ref)
            h = jnp.maximum(jnp.dot(z, w1_ref[...],
                                    preferred_element_type=jnp.float32) + b1_ref[...], 0.0)
            h = jnp.maximum(jnp.dot(h, w2_ref[...],
                                    preferred_element_type=jnp.float32) + b2_ref[...], 0.0)
            y = jnp.dot(h, w3_ref[...],
                        preferred_element_type=jnp.float32) + b3_ref[...]
            out_ref[...] = y.astype(out_ref.dtype)

    return kernel


def prepare_params(params):
    """Precompute the lane-replicated layer-0 weight once (w0big[r] = w0[r % 3])."""
    p = dict(params)
    p["w0big"] = jnp.tile(params["w0"], (W_MAX // 3, 1))     # (W_MAX, latent)
    return p


def mlp2_forward(x, params):
    """x: (B, N, 3) float32. params: w0..w3 (in,out), b0..b3 (1,out), optional w0big."""
    B, N, C = x.shape
    assert C == 3, "MLP2.map_to_latent expects 3 input coordinates"
    latent = params["w0"].shape[1]
    hidden = params["w1"].shape[1]
    O = params["w3"].shape[1]

    # ---- batch tiling: balanced TB, no batch padding (ragged last tile OK) ----
    n_btiles = -(-B // MAX_TB)
    TB = _round_up(-(-B // n_btiles), 8)
    if TB >= B:
        TB = B                              # single full-batch tile (full-dim block)
    b_grid = pl.cdiv(B, TB)

    # ---- point-axis tiling over the flattened (point, coord) axis, no padding ----
    M = 3 * N
    W = M if M <= W_MAX else W_MAX          # chunk lane width (multiple of 3)
    k_grid = pl.cdiv(M, W)

    # Free, contiguous reshape: (B, N, 3) -> (B, 3N). No HBM copy.
    x2 = x.reshape(B, M)

    # Lane-replicated layer-0 weight (precomputed once; sliced per chunk width).
    w0big = params.get("w0big")
    if w0big is None:
        w0big = jnp.tile(params["w0"], (W_MAX // 3, 1))
    if W < W_MAX:
        w0big = w0big[:W]                   # rows r still equal w0[r % 3]

    # SMEM scalars: true flattened length (for tail masking) and 1/N (mean).
    lane_limit = jnp.array([M], dtype=jnp.int32)
    inv_n = jnp.array([1.0 / N], dtype=jnp.float32)

    operands = (w0big, params["b0"], params["w1"], params["b1"],
                params["w2"], params["b2"], params["w3"], params["b3"])
    param_bytes = sum(int(o.size) * o.dtype.itemsize for o in operands)
    x_bytes = int(x2.size) * x2.dtype.itemsize
    head_flops = 2 * B * (W * latent + latent * hidden + hidden * hidden + hidden * O)
    cost = pl.CostEstimate(
        flops=int(B * M + head_flops),
        transcendentals=0,
        bytes_accessed=int(x_bytes + param_bytes + B * O * 4),
    )

    kernel = make_mlp2_kernel(W)
    const = lambda b, k, lim, inv: (0, 0)   # resident weights/biases

    out = pl.pallas_call(
        kernel,
        out_shape=jax.ShapeDtypeStruct((B, O), jnp.float32),
        grid_spec=pltpu.PrefetchScalarGridSpec(
            num_scalar_prefetch=2,
            grid=(b_grid, k_grid),
            in_specs=[
                pl.BlockSpec((TB, W), lambda b, k, lim, inv: (b, k)),
                pl.BlockSpec(w0big.shape, const),
                pl.BlockSpec(params["b0"].shape, const),
                pl.BlockSpec(params["w1"].shape, const),
                pl.BlockSpec(params["b1"].shape, const),
                pl.BlockSpec(params["w2"].shape, const),
                pl.BlockSpec(params["b2"].shape, const),
                pl.BlockSpec(params["w3"].shape, const),
                pl.BlockSpec(params["b3"].shape, const),
            ],
            out_specs=pl.BlockSpec((TB, O), lambda b, k, lim, inv: (b, 0)),
            scratch_shapes=[pltpu.VMEM((TB, W), jnp.float32)],
        ),
        compiler_params=pltpu.CompilerParams(
            dimension_semantics=("parallel", "arbitrary"),
            vmem_limit_bytes=VMEM_LIMIT,
        ),
        cost_estimate=cost,
    )(lane_limit, inv_n, x2, *operands)

    return out


def init_params(key, latent_dim, hidden_dim, output_dim):
    """Deterministic init mimicking torch.nn.Linear's U(-1/sqrt(fan_in), +1/sqrt(fan_in))."""
    dims = [(3, latent_dim), (latent_dim, hidden_dim),
            (hidden_dim, hidden_dim), (hidden_dim, output_dim)]
    params = {}
    for i, (fan_in, fan_out) in enumerate(dims):
        key, kw, kb = jax.random.split(key, 3)
        bound = 1.0 / jnp.sqrt(jnp.float32(fan_in))
        params[f"w{i}"] = jax.random.uniform(
            kw, (fan_in, fan_out), jnp.float32, -bound, bound)
        params[f"b{i}"] = jax.random.uniform(
            kb, (1, fan_out), jnp.float32, -bound, bound)
    return params


def mlp2_reference(x, params):
    """Pure-JAX reference in the original (pre-hoist) operation order."""
    z = jnp.einsum("bnc,cl->bnl", x, params["w0"]) + params["b0"]
    z = jnp.mean(z, axis=1)
    h = jnp.maximum(z @ params["w1"] + params["b1"], 0.0)
    h = jnp.maximum(h @ params["w2"] + params["b2"], 0.0)
    return h @ params["w3"] + params["b3"]


if __name__ == "__main__":
    # Keep reference matmuls in full f32 so the comparison is meaningful.
    jax.config.update("jax_default_matmul_precision", "highest")

    latent_dim, hidden_dim, output_dim = 16, 32, 8
    key = jax.random.PRNGKey(0)
    key, kparams = jax.random.split(key)
    params = prepare_params(init_params(kparams, latent_dim, hidden_dim, output_dim))

    fwd = jax.jit(mlp2_forward)

    ok = True
    # (1) tiny point set (single chunk, lane width = 24, no padding anywhere)
    # (2) mid point set, N not a multiple of 128, single chunk
    # (3) larger point set: 2 chunks, ragged last chunk exercising the in-kernel mask
    for (B, N) in [(2, 8), (3, 1000), (2, 4500)]:
        key, kx = jax.random.split(key)
        x = jax.random.normal(kx, (B, N, 3), jnp.float32)

        out = jax.block_until_ready(fwd(x, params))
        ref = mlp2_reference(x, params)

        ok = ok and out.shape == (B, output_dim)
        ok = ok and bool(jnp.allclose(out, ref, atol=1e-4, rtol=1e-4))

    assert ok
    print("KERNEL_OK")
</pallas_src>

<mosaic_0001>
module attributes {stable_mosaic.version = 11 : i64} {
  func.func @kernel(%arg0: i32, %arg1: i32, %arg2: memref<1xi32, #tpu.memory_space<smem>>, %arg3: memref<1xf32, #tpu.memory_space<smem>>, %arg4: memref<2x24xf32, #tpu.memory_space<vmem>>, %arg5: memref<24x16xf32, #tpu.memory_space<vmem>>, %arg6: memref<1x16xf32, #tpu.memory_space<vmem>>, %arg7: memref<16x32xf32, #tpu.memory_space<vmem>>, %arg8: memref<1x32xf32, #tpu.memory_space<vmem>>, %arg9: memref<32x32xf32, #tpu.memory_space<vmem>>, %arg10: memref<1x32xf32, #tpu.memory_space<vmem>>, %arg11: memref<32x8xf32, #tpu.memory_space<vmem>>, %arg12: memref<1x8xf32, #tpu.memory_space<vmem>>, %arg13: memref<2x8xf32, #tpu.memory_space<vmem>>, %arg14: memref<2x24xf32, #tpu.memory_space<vmem>>) attributes {dimension_semantics = [#tpu.dimension_semantics<parallel>, #tpu.dimension_semantics<arbitrary>], iteration_bounds = array<i64: 1, 1>, scalar_prefetch = 2 : i64, scratch_operands = 1 : i64, tpu.core_type = #tpu.core_type<tc>, window_params = [{transform_indices = @transform_0, window_bounds = array<i64: 2, 24>}, {pipeline_mode = #tpu.pipeline_mode<synchronous>, transform_indices = @transform_1, window_bounds = array<i64: 24, 16>}, {pipeline_mode = #tpu.pipeline_mode<synchronous>, transform_indices = @transform_2, window_bounds = array<i64: 1, 16>}, {pipeline_mode = #tpu.pipeline_mode<synchronous>, transform_indices = @transform_3, window_bounds = array<i64: 16, 32>}, {pipeline_mode = #tpu.pipeline_mode<synchronous>, transform_indices = @transform_4, window_bounds = array<i64: 1, 32>}, {pipeline_mode = #tpu.pipeline_mode<synchronous>, transform_indices = @transform_5, window_bounds = array<i64: 32, 32>}, {pipeline_mode = #tpu.pipeline_mode<synchronous>, transform_indices = @transform_6, window_bounds = array<i64: 1, 32>}, {pipeline_mode = #tpu.pipeline_mode<synchronous>, transform_indices = @transform_7, window_bounds = array<i64: 32, 8>}, {pipeline_mode = #tpu.pipeline_mode<synchronous>, transform_indices = @transform_8, window_bounds = array<i64: 1, 8>}, {transform_indices = @transform_9, window_bounds = array<i64: 2, 8>}]} {
    %c0_i32 = arith.constant 0 : i32
    %0 = arith.cmpi eq, %arg1, %c0_i32 : i32
    %1 = arith.extui %0 : i1 to i32
    %c0_i32_0 = arith.constant 0 : i32
    %2 = arith.cmpi ne, %1, %c0_i32_0 : i32
    scf.if %2 {
      %cst = arith.constant 0.000000e+00 : f32
      %9 = vector.broadcast %cst : f32 to vector<2x24xf32>
      %c0 = arith.constant 0 : index
      %c0_5 = arith.constant 0 : index
      %10 = vector.load %arg14[%c0, %c0_5] : memref<2x24xf32, #tpu.memory_space<vmem>>, vector<2x24xf32>
      tpu.vector_store %arg14[%c0, %c0_5], %9 {strides = array<i32>} : memref<2x24xf32, #tpu.memory_space<vmem>>, vector<2x24xf32>,
    } else {
    }
    %c0_i32_1 = arith.constant 0 : i32
    %3 = arith.cmpi slt, %arg1, %c0_i32_1 : i32
    %4 = arith.extui %3 : i1 to i32
    %c0_i32_2 = arith.constant 0 : i32
    %5 = arith.cmpi ne, %4, %c0_i32_2 : i32
    scf.if %5 {
      %c0 = arith.constant 0 : index
      %c0_5 = arith.constant 0 : index
      %9 = vector.load %arg14[%c0, %c0_5] : memref<2x24xf32, #tpu.memory_space<vmem>>, vector<2x24xf32>
      %c0_6 = arith.constant 0 : index
      %c0_7 = arith.constant 0 : index
      %10 = vector.load %arg4[%c0_6, %c0_7] : memref<2x24xf32, #tpu.memory_space<vmem>>, vector<2x24xf32>
      %11 = arith.addf %9, %10 : vector<2x24xf32>
      %c0_8 = arith.constant 0 : index
      %c0_9 = arith.constant 0 : index
      %12 = vector.load %arg14[%c0_8, %c0_9] : memref<2x24xf32, #tpu.memory_space<vmem>>, vector<2x24xf32>
      tpu.vector_store %arg14[%c0_8, %c0_9], %11 {strides = array<i32>} : memref<2x24xf32, #tpu.memory_space<vmem>>, vector<2x24xf32>,
    } else {
    }
    %c0_i32_3 = arith.constant 0 : i32
    %6 = arith.cmpi eq, %arg1, %c0_i32_3 : i32
    %7 = arith.extui %6 : i1 to i32
    %c0_i32_4 = arith.constant 0 : i32
    %8 = arith.cmpi ne, %7, %c0_i32_4 : i32
    scf.if %8 {
      %c0 = arith.constant 0 : index
      %9 = memref.load %arg2[%c0] : memref<1xi32, #tpu.memory_space<smem>>
      %c24_i32 = arith.constant 24 : i32
      %10 = arith.muli %arg1, %c24_i32 : i32
      %11 = arith.subi %9, %10 : i32
      %12 = tpu.iota {dimensions = array<i32: 1>} : vector<1x24xi32>
      %c0_5 = arith.constant 0 : index
      %c0_6 = arith.constant 0 : index
      %13 = vector.load %arg14[%c0_5, %c0_6] : memref<2x24xf32, #tpu.memory_space<vmem>>, vector<2x24xf32>
      %14 = vector.broadcast %11 : i32 to vector<1x24xi32>
      %15 = arith.cmpi slt, %12, %14 : vector<1x24xi32>
      %c0_7 = arith.constant 0 : index
      %c0_8 = arith.constant 0 : index
      %16 = vector.load %arg4[%c0_7, %c0_8] : memref<2x24xf32, #tpu.memory_space<vmem>>, vector<2x24xf32>
      %cst = arith.constant 0.000000e+00 : f32
      %17 = vector.shape_cast %15 : vector<1x24xi1> to vector<1x24xi1>
      %18 = vector.broadcast %17 : vector<1x24xi1> to vector<2x24xi1>
      %19 = vector.broadcast %cst : f32 to vector<2x24xf32>
      %20 = arith.select %18, %16, %19 : vector<2x24xi1>, vector<2x24xf32>
      %21 = arith.addf %13, %20 : vector<2x24xf32>
      %c0_9 = arith.constant 0 : index
      %c0_10 = arith.constant 0 : index
      %22 = vector.load %arg14[%c0_9, %c0_10] : memref<2x24xf32, #tpu.memory_space<vmem>>, vector<2x24xf32>
      tpu.vector_store %arg14[%c0_9, %c0_10], %21 {strides = array<i32>} : memref<2x24xf32, #tpu.memory_space<vmem>>, vector<2x24xf32>,
      %c0_11 = arith.constant 0 : index
      %c0_12 = arith.constant 0 : index
      %23 = vector.load %arg14[%c0_11, %c0_12] : memref<2x24xf32, #tpu.memory_space<vmem>>, vector<2x24xf32>
      %c0_13 = arith.constant 0 : index
      %c0_14 = arith.constant 0 : index
      %24 = vector.load %arg5[%c0_13, %c0_14] : memref<24x16xf32, #tpu.memory_space<vmem>>, vector<24x16xf32>
      %cst_15 = arith.constant dense<0.000000e+00> : vector<2x16xf32>
      %25 = tpu.matmul %23, %24, %cst_15 {dimension_numbers = #tpu.dot_dimension_numbers<[1], [0], [0], [1], [0, 0, 1, 1], [], []>, precision = #tpu.contract_precision<fp32>} : vector<2x24xf32>, vector<24x16xf32>, vector<2x16xf32> -> vector<2x16xf32>
      %c0_16 = arith.constant 0 : index
      %26 = memref.load %arg3[%c0_16] : memref<1xf32, #tpu.memory_space<smem>>
      %27 = vector.broadcast %26 : f32 to vector<2x16xf32>
      %28 = arith.mulf %25, %27 : vector<2x16xf32>
      %c0_17 = arith.constant 0 : index
      %c0_18 = arith.constant 0 : index
      %29 = vector.load %arg6[%c0_17, %c0_18] : memref<1x16xf32, #tpu.memory_space<vmem>>, vector<1x16xf32>
      %30 = vector.broadcast %29 : vector<1x16xf32> to vector<2x16xf32>
      %31 = arith.addf %28, %30 : vector<2x16xf32>
      %c0_19 = arith.constant 0 : index
      %c0_20 = arith.constant 0 : index
      %32 = vector.load %arg7[%c0_19, %c0_20] : memref<16x32xf32, #tpu.memory_space<vmem>>, vector<16x32xf32>
      %cst_21 = arith.constant dense<0.000000e+00> : vector<2x32xf32>
      %33 = tpu.matmul %31, %32, %cst_21 {dimension_numbers = #tpu.dot_dimension_numbers<[1], [0], [0], [1], [0, 0, 1, 1], [], []>, precision = #tpu.contract_precision<fp32>} : vector<2x16xf32>, vector<16x32xf32>, vector<2x32xf32> -> vector<2x32xf32>
      %c0_22 = arith.constant 0 : index
      %c0_23 = arith.constant 0 : index
      %34 = vector.load %arg8[%c0_22, %c0_23] : memref<1x32xf32, #tpu.memory_space<vmem>>, vector<1x32xf32>
      %35 = vector.broadcast %34 : vector<1x32xf32> to vector<2x32xf32>
      %36 = arith.addf %33, %35 : vector<2x32xf32>
      %cst_24 = arith.constant 0.000000e+00 : f32
      %37 = vector.broadcast %cst_24 : f32 to vector<2x32xf32>
      %38 = arith.maximumf %36, %37 : vector<2x32xf32>
      %c0_25 = arith.constant 0 : index
      %c0_26 = arith.constant 0 : index
      %39 = vector.load %arg9[%c0_25, %c0_26] : memref<32x32xf32, #tpu.memory_space<vmem>>, vector<32x32xf32>
      %cst_27 = arith.constant dense<0.000000e+00> : vector<2x32xf32>
      %40 = tpu.matmul %38, %39, %cst_27 {dimension_numbers = #tpu.dot_dimension_numbers<[1], [0], [0], [1], [0, 0, 1, 1], [], []>, precision = #tpu.contract_precision<fp32>} : vector<2x32xf32>, vector<32x32xf32>, vector<2x32xf32> -> vector<2x32xf32>
      %c0_28 = arith.constant 0 : index
      %c0_29 = arith.constant 0 : index
      %41 = vector.load %arg10[%c0_28, %c0_29] : memref<1x32xf32, #tpu.memory_space<vmem>>, vector<1x32xf32>
      %42 = vector.broadcast %41 : vector<1x32xf32> to vector<2x32xf32>
      %43 = arith.addf %40, %42 : vector<2x32xf32>
      %cst_30 = arith.constant 0.000000e+00 : f32
      %44 = vector.broadcast %cst_30 : f32 to vector<2x32xf32>
      %45 = arith.maximumf %43, %44 : vector<2x32xf32>
      %c0_31 = arith.constant 0 : index
      %c0_32 = arith.constant 0 : index
      %46 = vector.load %arg11[%c0_31, %c0_32] : memref<32x8xf32, #tpu.memory_space<vmem>>, vector<32x8xf32>
      %cst_33 = arith.constant dense<0.000000e+00> : vector<2x8xf32>
      %47 = tpu.matmul %45, %46, %cst_33 {dimension_numbers = #tpu.dot_dimension_numbers<[1], [0], [0], [1], [0, 0, 1, 1], [], []>, precision = #tpu.contract_precision<fp32>} : vector<2x32xf32>, vector<32x8xf32>, vector<2x8xf32> -> vector<2x8xf32>
      %c0_34 = arith.constant 0 : index
      %c0_35 = arith.constant 0 : index
      %48 = vector.load %arg12[%c0_34, %c0_35] : memref<1x8xf32, #tpu.memory_space<vmem>>, vector<1x8xf32>
      %49 = vector.broadcast %48 : vector<1x8xf32> to vector<2x8xf32>
      %50 = arith.addf %47, %49 : vector<2x8xf32>
      %c0_36 = arith.constant 0 : index
      %c0_37 = arith.constant 0 : index
      %51 = vector.load %arg13[%c0_36, %c0_37] : memref<2x8xf32, #tpu.memory_space<vmem>>, vector<2x8xf32>
      tpu.vector_store %arg13[%c0_36, %c0_37], %50 {strides = array<i32>} : memref<2x8xf32, #tpu.memory_space<vmem>>, vector<2x8xf32>,
    } else {
    }
    return
  }
  func.func @transform_0(%arg0: i32, %arg1: i32, %arg2: memref<1xi32, #tpu.memory_space<smem>>, %arg3: memref<1xf32, #tpu.memory_space<smem>>) -> (i32, i32) {
    %c0_i32 = arith.constant 0 : i32
    return %arg0, %arg1 : i32, i32
  }
  func.func @transform_1(%arg0: i32, %arg1: i32, %arg2: memref<1xi32, #tpu.memory_space<smem>>, %arg3: memref<1xf32, #tpu.memory_space<smem>>) -> (i32, i32) {
    %c0_i32 = arith.constant 0 : i32
    %c0_i32_0 = arith.constant 0 : i32
    %c0_i32_1 = arith.constant 0 : i32
    return %c0_i32, %c0_i32_0 : i32, i32
  }
  func.func @transform_2(%arg0: i32, %arg1: i32, %arg2: memref<1xi32, #tpu.memory_space<smem>>, %arg3: memref<1xf32, #tpu.memory_space<smem>>) -> (i32, i32) {
    %c0_i32 = arith.constant 0 : i32
    %c0_i32_0 = arith.constant 0 : i32
    %c0_i32_1 = arith.constant 0 : i32
    return %c0_i32, %c0_i32_0 : i32, i32
  }
  func.func @transform_3(%arg0: i32, %arg1: i32, %arg2: memref<1xi32, #tpu.memory_space<smem>>, %arg3: memref<1xf32, #tpu.memory_space<smem>>) -> (i32, i32) {
    %c0_i32 = arith.constant 0 : i32
    %c0_i32_0 = arith.constant 0 : i32
    %c0_i32_1 = arith.constant 0 : i32
    return %c0_i32, %c0_i32_0 : i32, i32
  }
  func.func @transform_4(%arg0: i32, %arg1: i32, %arg2: memref<1xi32, #tpu.memory_space<smem>>, %arg3: memref<1xf32, #tpu.memory_space<smem>>) -> (i32, i32) {
    %c0_i32 = arith.constant 0 : i32
    %c0_i32_0 = arith.constant 0 : i32
    %c0_i32_1 = arith.constant 0 : i32
    return %c0_i32, %c0_i32_0 : i32, i32
  }
  func.func @transform_5(%arg0: i32, %arg1: i32, %arg2: memref<1xi32, #tpu.memory_space<smem>>, %arg3: memref<1xf32, #tpu.memory_space<smem>>) -> (i32, i32) {
    %c0_i32 = arith.constant 0 : i32
    %c0_i32_0 = arith.constant 0 : i32
    %c0_i32_1 = arith.constant 0 : i32
    return %c0_i32, %c0_i32_0 : i32, i32
  }
  func.func @transform_6(%arg0: i32, %arg1: i32, %arg2: memref<1xi32, #tpu.memory_space<smem>>, %arg3: memref<1xf32, #tpu.memory_space<smem>>) -> (i32, i32) {
    %c0_i32 = arith.constant 0 : i32
    %c0_i32_0 = arith.constant 0 : i32
    %c0_i32_1 = arith.constant 0 : i32
    return %c0_i32, %c0_i32_0 : i32, i32
  }
  func.func @transform_7(%arg0: i32, %arg1: i32, %arg2: memref<1xi32, #tpu.memory_space<smem>>, %arg3: memref<1xf32, #tpu.memory_space<smem>>) -> (i32, i32) {
    %c0_i32 = arith.constant 0 : i32
    %c0_i32_0 = arith.constant 0 : i32
    %c0_i32_1 = arith.constant 0 : i32
    return %c0_i32, %c0_i32_0 : i32, i32
  }
  func.func @transform_8(%arg0: i32, %arg1: i32, %arg2: memref<1xi32, #tpu.memory_space<smem>>, %arg3: memref<1xf32, #tpu.memory_space<smem>>) -> (i32, i32) {
    %c0_i32 = arith.constant 0 : i32
    %c0_i32_0 = arith.constant 0 : i32
    %c0_i32_1 = arith.constant 0 : i32
    return %c0_i32, %c0_i32_0 : i32, i32
  }
  func.func @transform_9(%arg0: i32, %arg1: i32, %arg2: memref<1xi32, #tpu.memory_space<smem>>, %arg3: memref<1xf32, #tpu.memory_space<smem>>) -> (i32, i32) {
    %c0_i32 = arith.constant 0 : i32
    %c0_i32_0 = arith.constant 0 : i32
    return %arg0, %c0_i32 : i32, i32
  }
}

</mosaic_0001>

<llo_original>
// kernel: mlp2_forward.1
$region0: #{mlp2_forward.1}
  #allocation0 [shape = 'u32[]', space=smem, size = 0x4, offset = 0x4, fixed_abs, tag = 'smem constant byte address 0x4 - core index']
  #allocation1 [shape = 'u32[72,128]{1,0:T(1,128)}', space=vmem, size = 0x9000, scoped, tag = 'internal scratch']
  #allocation2 [shape = 'f32[2,24]{1,0:T(2,128)}', space=vmem, size = 0x400, scoped, tag = 'scratch operand']
  #allocation3 [shape = 's32[1]{0}', space=sflag, size = 0x4, scoped, tag = 'scoped memory for mlp2_forward.1']
  #allocation4 [shape = 's32[1]{0:T(128)S(6)}', space=smem, size = 0x200, scoped, tag = 'prefetched SMEM operand 0']
  #allocation5 [shape = 'f32[1]{0:T(128)S(6)}', space=smem, size = 0x200, scoped, tag = 'prefetched SMEM operand 1']
  %s0 = inlined_call_operand.<no memory space> [shape: s32[1], index: 0, kind: input, shape index: {}]
  %s1 = inlined_call_operand.<no memory space> [shape: f32[1], index: 1, kind: input, shape index: {}]
  %s2 = inlined_call_operand.vmem [shape: f32[2,24], index: 2, kind: input, shape index: {}]
  %s3 = inlined_call_operand.vmem [shape: f32[24,16], index: 3, kind: input, shape index: {}]
  %s4 = inlined_call_operand.vmem [shape: f32[1,16], index: 4, kind: input, shape index: {}]
  %s5 = inlined_call_operand.vmem [shape: f32[16,32], index: 5, kind: input, shape index: {}]
  %s6 = inlined_call_operand.vmem [shape: f32[1,32], index: 6, kind: input, shape index: {}]
  %s7 = inlined_call_operand.vmem [shape: f32[32,32], index: 7, kind: input, shape index: {}]
  %s8 = inlined_call_operand.vmem [shape: f32[1,32], index: 8, kind: input, shape index: {}]
  %s9 = inlined_call_operand.vmem [shape: f32[32,8], index: 9, kind: input, shape index: {}]
  %s10 = inlined_call_operand.vmem [shape: f32[1,8], index: 10, kind: input, shape index: {}]
  %s11 = inlined_call_operand.hbm [shape: f32[2,8], index: 11, kind: output, shape index: {}]
  %s12 = sld [smem:[#allocation0]]
  $region58: #{mlp2_forward.1} parent=0
    _
  %s14 = ssub.s32 1, %s12
  %s15 = scalar_select 0, %s14, %s12
  %16 = sst [smem:[#allocation4]] %s0
  %17 = sst [smem:[#allocation5]] %s1
  $region1: #{mlp2_forward.1} parent=0
    #allocation6 [shape = 'u8[1024]{0}', space=vmem, size = 0x400, scoped, tag = 'output window, operand 0, single buffered']
    #allocation7 [shape = 's32[1]{0}', space=sflag, size = 0x4, scoped, tag = 'scoped memory for mlp2_forward.1']
    %18 = vsyncpa [#allocation7], 0
    // Predicated region
    $region2: #{mlp2_forward.1} parent=1 // pred_check
      _
    $region3: #{mlp2_forward.1} parent=1 // pred_check_branch
      %20 = sbr.rel (0) target = $region5
    $region4: #{mlp2_forward.1} parent=1 // pred_region
      _
    $region5: #{mlp2_forward.1} parent=1 // pred_fallthru
      _
    // Predicated region
    $region6: #{mlp2_forward.1} parent=1 // pred_check
      _
    $region7: #{mlp2_forward.1} parent=1 // pred_check_branch
      %22 = sbr.rel (0) target = $region9
    $region8: #{mlp2_forward.1} parent=1 // pred_region
      _
    $region9: #{mlp2_forward.1} parent=1 // pred_fallthru
      _
    // Predicated region
    $region10: #{mlp2_forward.1} parent=1 // pred_check
      _
    $region11: #{mlp2_forward.1} parent=1 // pred_check_branch
      %24 = sbr.rel (0) target = $region13
    $region12: #{mlp2_forward.1} parent=1 // pred_region
      _
    $region13: #{mlp2_forward.1} parent=1 // pred_fallthru
      _
    // Predicated region
    $region14: #{mlp2_forward.1} parent=1 // pred_check
      _
    $region15: #{mlp2_forward.1} parent=1 // pred_check_branch
      %26 = sbr.rel (0) target = $region17
    $region16: #{mlp2_forward.1} parent=1 // pred_region
      _
    $region17: #{mlp2_forward.1} parent=1 // pred_fallthru
      _
    // Predicated region
    $region18: #{mlp2_forward.1} parent=1 // pred_check
      _
    $region19: #{mlp2_forward.1} parent=1 // pred_check_branch
      %28 = sbr.rel (0) target = $region21
    $region20: #{mlp2_forward.1} parent=1 // pred_region
      _
    $region21: #{mlp2_forward.1} parent=1 // pred_fallthru
      _
    // Predicated region
    $region22: #{mlp2_forward.1} parent=1 // pred_check
      _
    $region23: #{mlp2_forward.1} parent=1 // pred_check_branch
      %30 = sbr.rel (0) target = $region25
    $region24: #{mlp2_forward.1} parent=1 // pred_region
      _
    $region25: #{mlp2_forward.1} parent=1 // pred_fallthru
      _
    // Predicated region
    $region26: #{mlp2_forward.1} parent=1 // pred_check
      _
    $region27: #{mlp2_forward.1} parent=1 // pred_check_branch
      %32 = sbr.rel (0) target = $region29
    $region28: #{mlp2_forward.1} parent=1 // pred_region
      _
    $region29: #{mlp2_forward.1} parent=1 // pred_fallthru
      _
    // Predicated region
    $region30: #{mlp2_forward.1} parent=1 // pred_check
      _
    $region31: #{mlp2_forward.1} parent=1 // pred_check_branch
      %34 = sbr.rel (0) target = $region33
    $region32: #{mlp2_forward.1} parent=1 // pred_region
      _
    $region33: #{mlp2_forward.1} parent=1 // pred_fallthru
      _
    // Predicated region
    $region34: #{mlp2_forward.1} parent=1 // pred_check
      _
    $region35: #{mlp2_forward.1} parent=1 // pred_check_branch
      %36 = sbr.rel (0) target = $region37
    $region36: #{mlp2_forward.1} parent=1 // pred_region
      _
    $region37: #{mlp2_forward.1} parent=1 // pred_fallthru
      _
    %p37 = scmp.eq.s32.totalorder 0, 0
    // Predicated region
    $region38: #{mlp2_forward.1} parent=1 // pred_check
      %p38 = pneg %p37
    $region39: #{mlp2_forward.1} parent=1 // pred_check_branch
      %40 = sbr.rel (%p38) target = $region41
    $region40: #{mlp2_forward.1} parent=1 // pred_region
      %vm41 = vcmask 189440
      %42 = vst.msk [vmem:[#allocation2] sm:$0x3] %vm41, 0.0
    $region41: #{mlp2_forward.1} parent=1 // pred_fallthru
      _
    %p43 = scmp.lt.s32.totalorder 0, 0
    // Predicated region
    $region42: #{mlp2_forward.1} parent=1 // pred_check
      %p44 = pneg %p43
    $region43: #{mlp2_forward.1} parent=1 // pred_check_branch
      %46 = sbr.rel (%p44) target = $region45
    $region44: #{mlp2_forward.1} parent=1 // pred_region
      %v47 = vld [vmem:[#allocation2] sm:$0x3]
      %v48 = vld [vmem:[%s2] sm:$0x3]
      %v49 = vadd.f32 %v47, %v48
      %vm50 = vcmask 189440
      %51 = vst.msk [vmem:[#allocation2] sm:$0x3] %vm50, %v49
    $region45: #{mlp2_forward.1} parent=1 // pred_fallthru
      _
    // Predicated region
    $region46: #{mlp2_forward.1} parent=1 // pred_check
      %p52 = pneg %p37
    $region47: #{mlp2_forward.1} parent=1 // pred_check_branch
      %54 = sbr.rel (%p52) target = $region49
    $region48: #{mlp2_forward.1} parent=1 // pred_region
      %s55 = sld [smem:[#allocation4]]
      %s56 = smul.u32 0, 24
      %s57 = ssub.s32 %s55, %s56
      %v58 = vlaneseq
      %v59 = vand.u32 %v58, 127
      %v60 = vld [vmem:[#allocation2] sm:$0x3]
      %v61 = vstv %s57
      %vm62 = vcmp.lt.s32.totalorder %v59, %v61
      %v63 = vld [vmem:[%s2] sm:$0x3]
      %v64 = vsel %vm62, 1, 0
      %vm65 = vcmp.eq.s32.totalorder %v64, 1
      %v66 = vsel %vm65, %v63, 0.0
      %v67 = vadd.f32 %v60, %v66
      %vm68 = vcmask 189440
      %69 = vst.msk [vmem:[#allocation2] sm:$0x3] %vm68, %v67
      %v70 = vld [vmem:[#allocation2] sm:$0x3]
      %v71 = vld [vmem:[%s3] sm:$0xff]
      %v72 = vld [vmem:[%s3 + $0x8] sm:$0xff]
      %v73 = vld [vmem:[%s3 + $0x10] sm:$0xff]
      %vm74 = vcmask 195584
      %v76 = vsel %vm74, %v70, 0
      %78 = vmatpush.msra.mxu0 0.0
      %79 = vmatpush.msra.mxu0 0.0
      %80 = vmatpush.msra.mxu0 0.0
      %81 = vmatpush.msra.mxu0 0.0
      %82 = vmatpush.msra.mxu0 0.0
      %83 = vmatpush.msra.mxu0 0.0
      %84 = vmatpush.msra.mxu0 0.0
      %85 = vmatpush.msra.mxu0 0.0
      %86 = vmatpush.msra.mxu0 0.0
      %87 = vmatpush.msra.mxu0 0.0
      %88 = vmatpush.msra.mxu0 0.0
      %89 = vmatpush.msra.mxu0 0.0
      %90 = vmatpush.msra.mxu0 0.0
      %v91 = vand.u32 %v73, 4294901760
      %92 = vmatpush.msra.mxu0 %v91
      %v93 = vand.u32 %v72, 4294901760
      %94 = vmatpush.msra.mxu0 %v93
      %v95 = vand.u32 %v71, 4294901760
      %96 = vmatpush.msra.mxu0 %v95
      %v97 = vand.u32 %v76, 4294901760
      %v98 = vsub.f32 %v76, %v97
      %v99 = vand.u32 %v98, 4294901760
      %v100 = vsub.f32 %v98, %v99
      %v101 = vand.u32 %v100, 4294901760
      %102 = vmatmul.f32.gmra.mxu0 %v101
      %v103 = vpop.f32.mrf.mxu0
      %v104 = vadd.f32 0.0, %v103
      %105 = vdwg.mxu0
      %106 = vmatpush.msra.mxu0 0.0
      %107 = vmatpush.msra.mxu0 0.0
      %108 = vmatpush.msra.mxu0 0.0
      %109 = vmatpush.msra.mxu0 0.0
      %110 = vmatpush.msra.mxu0 0.0
      %111 = vmatpush.msra.mxu0 0.0
      %112 = vmatpush.msra.mxu0 0.0
      %113 = vmatpush.msra.mxu0 0.0
      %114 = vmatpush.msra.mxu0 0.0
      %115 = vmatpush.msra.mxu0 0.0
      %116 = vmatpush.msra.mxu0 0.0
      %117 = vmatpush.msra.mxu0 0.0
      %118 = vmatpush.msra.mxu0 0.0
      %v119 = vand.u32 %v73, 4294901760
      %v120 = vsub.f32 %v73, %v119
      %v121 = vand.u32 %v120, 4294901760
      %v122 = vsub.f32 %v120, %v121
      %v123 = vand.u32 %v122, 4294901760
      %124 = vmatpush.msra.mxu0 %v123
      %v125 = vand.u32 %v72, 4294901760
      %v126 = vsub.f32 %v72, %v125
      %v127 = vand.u32 %v126, 4294901760
      %v128 = vsub.f32 %v126, %v127
      %v129 = vand.u32 %v128, 4294901760
      %130 = vmatpush.msra.mxu0 %v129
      %v131 = vand.u32 %v71, 4294901760
      %v132 = vsub.f32 %v71, %v131
      %v133 = vand.u32 %v132, 4294901760
      %v134 = vsub.f32 %v132, %v133
      %v135 = vand.u32 %v134, 4294901760
      %136 = vmatpush.msra.mxu0 %v135
      %v137 = vand.u32 %v76, 4294901760
      %138 = vmatmul.f32.gmra.mxu0 %v137
      %v139 = vpop.f32.mrf.mxu0
      %v140 = vadd.f32 %v104, %v139
      %141 = vdwg.mxu0
      %142 = vmatpush.msra.mxu0 0.0
      %143 = vmatpush.msra.mxu0 0.0
      %144 = vmatpush.msra.mxu0 0.0
      %145 = vmatpush.msra.mxu0 0.0
      %146 = vmatpush.msra.mxu0 0.0
      %147 = vmatpush.msra.mxu0 0.0
      %148 = vmatpush.msra.mxu0 0.0
      %149 = vmatpush.msra.mxu0 0.0
      %150 = vmatpush.msra.mxu0 0.0
      %151 = vmatpush.msra.mxu0 0.0
      %152 = vmatpush.msra.mxu0 0.0
      %153 = vmatpush.msra.mxu0 0.0
      %154 = vmatpush.msra.mxu0 0.0
      %v155 = vand.u32 %v73, 4294901760
      %v156 = vsub.f32 %v73, %v155
      %157 = vmatpush.msra.mxu0 %v156
      %v158 = vand.u32 %v72, 4294901760
      %v159 = vsub.f32 %v72, %v158
      %160 = vmatpush.msra.mxu0 %v159
      %v161 = vand.u32 %v71, 4294901760
      %v162 = vsub.f32 %v71, %v161
      %163 = vmatpush.msra.mxu0 %v162
      %v164 = vand.u32 %v76, 4294901760
      %v165 = vsub.f32 %v76, %v164
      %166 = vmatmul.f32.gmra.mxu0 %v165
      %v167 = vpop.f32.mrf.mxu0
      %v168 = vadd.f32 %v140, %v167
      %169 = vdwg.mxu0
      %170 = vmatpush.msra.mxu0 0.0
      %171 = vmatpush.msra.mxu0 0.0
      %172 = vmatpush.msra.mxu0 0.0
      %173 = vmatpush.msra.mxu0 0.0
      %174 = vmatpush.msra.mxu0 0.0
      %175 = vmatpush.msra.mxu0 0.0
      %176 = vmatpush.msra.mxu0 0.0
      %177 = vmatpush.msra.mxu0 0.0
      %178 = vmatpush.msra.mxu0 0.0
      %179 = vmatpush.msra.mxu0 0.0
      %180 = vmatpush.msra.mxu0 0.0
      %181 = vmatpush.msra.mxu0 0.0
      %182 = vmatpush.msra.mxu0 0.0
      %v183 = vand.u32 %v73, 4294901760
      %184 = vmatpush.msra.mxu0 %v183
      %v185 = vand.u32 %v72, 4294901760
      %186 = vmatpush.msra.mxu0 %v185
      %v187 = vand.u32 %v71, 4294901760
      %188 = vmatpush.msra.mxu0 %v187
      %v189 = vand.u32 %v76, 4294901760
      %v190 = vsub.f32 %v76, %v189
      %v191 = vand.u32 %v190, 4294901760
      %192 = vmatmul.f32.gmra.mxu0 %v191
      %v193 = vpop.f32.mrf.mxu0
      %v194 = vadd.f32 %v168, %v193
      %195 = vdwg.mxu0
      %196 = vmatpush.msra.mxu0 0.0
      %197 = vmatpush.msra.mxu0 0.0
      %198 = vmatpush.msra.mxu0 0.0
      %199 = vmatpush.msra.mxu0 0.0
      %200 = vmatpush.msra.mxu0 0.0
      %201 = vmatpush.msra.mxu0 0.0
      %202 = vmatpush.msra.mxu0 0.0
      %203 = vmatpush.msra.mxu0 0.0
      %204 = vmatpush.msra.mxu0 0.0
      %205 = vmatpush.msra.mxu0 0.0
      %206 = vmatpush.msra.mxu0 0.0
      %207 = vmatpush.msra.mxu0 0.0
      %208 = vmatpush.msra.mxu0 0.0
      %v209 = vand.u32 %v73, 4294901760
      %v210 = vsub.f32 %v73, %v209
      %v211 = vand.u32 %v210, 4294901760
      %212 = vmatpush.msra.mxu0 %v211
      %v213 = vand.u32 %v72, 4294901760
      %v214 = vsub.f32 %v72, %v213
      %v215 = vand.u32 %v214, 4294901760
      %216 = vmatpush.msra.mxu0 %v215
      %v217 = vand.u32 %v71, 4294901760
      %v218 = vsub.f32 %v71, %v217
      %v219 = vand.u32 %v218, 4294901760
      %220 = vmatpush.msra.mxu0 %v219
      %v221 = vand.u32 %v76, 4294901760
      %222 = vmatmul.f32.gmra.mxu0 %v221
      %v223 = vpop.f32.mrf.mxu0
      %v224 = vadd.f32 %v194, %v223
      %225 = vdwg.mxu0
      %226 = vmatpush.msra.mxu0 0.0
      %227 = vmatpush.msra.mxu0 0.0
      %228 = vmatpush.msra.mxu0 0.0
      %229 = vmatpush.msra.mxu0 0.0
      %230 = vmatpush.msra.mxu0 0.0
      %231 = vmatpush.msra.mxu0 0.0
      %232 = vmatpush.msra.mxu0 0.0
      %233 = vmatpush.msra.mxu0 0.0
      %234 = vmatpush.msra.mxu0 0.0
      %235 = vmatpush.msra.mxu0 0.0
      %236 = vmatpush.msra.mxu0 0.0
      %237 = vmatpush.msra.mxu0 0.0
      %238 = vmatpush.msra.mxu0 0.0
      %v239 = vand.u32 %v73, 4294901760
      %240 = vmatpush.msra.mxu0 %v239
      %v241 = vand.u32 %v72, 4294901760
      %242 = vmatpush.msra.mxu0 %v241
      %v243 = vand.u32 %v71, 4294901760
      %244 = vmatpush.msra.mxu0 %v243
      %v245 = vand.u32 %v76, 4294901760
      %246 = vmatmul.f32.gmra.mxu0 %v245
      %v247 = vpop.f32.mrf.mxu0
      %v248 = vadd.f32 %v224, %v247
      %249 = vdwg.mxu0
      %s250 = sld [smem:[#allocation5]]
      %v251 = vstv %s250
      %v252 = vmul.f32 %v248, %v251
      %v253 = vld [vmem:[%s4] sm:$0x1]
      %v255 = vperm.slane %v253, 0
      %v257 = vadd.f32 %v252, %v255
      %v258 = vld [vmem:[%s5] sm:$0xff]
      %v259 = vld [vmem:[%s5 + $0x8] sm:$0xff]
      %v260 = vld [vmem:[%s6] sm:$0x1]
      %v262 = vperm.slane %v260, 0
      %vm264 = vcmask 130048
      %v266 = vsel %vm264, %v257, 0
      %268 = vmatpush.msra.mxu0 0.0
      %269 = vmatpush.msra.mxu0 0.0
      %270 = vmatpush.msra.mxu0 0.0
      %271 = vmatpush.msra.mxu0 0.0
      %272 = vmatpush.msra.mxu0 0.0
      %273 = vmatpush.msra.mxu0 0.0
      %274 = vmatpush.msra.mxu0 0.0
      %275 = vmatpush.msra.mxu0 0.0
      %276 = vmatpush.msra.mxu0 0.0
      %277 = vmatpush.msra.mxu0 0.0
      %278 = vmatpush.msra.mxu0 0.0
      %279 = vmatpush.msra.mxu0 0.0
      %280 = vmatpush.msra.mxu0 0.0
      %281 = vmatpush.msra.mxu0 0.0
      %v282 = vand.u32 %v259, 4294901760
      %283 = vmatpush.msra.mxu0 %v282
      %v284 = vand.u32 %v258, 4294901760
      %285 = vmatpush.msra.mxu0 %v284
      %v286 = vand.u32 %v266, 4294901760
      %v287 = vsub.f32 %v266, %v286
      %v288 = vand.u32 %v287, 4294901760
      %v289 = vsub.f32 %v287, %v288
      %v290 = vand.u32 %v289, 4294901760
      %291 = vmatmul.f32.gmra.mxu0 %v290
      %v292 = vpop.f32.mrf.mxu0
      %v293 = vadd.f32 %v262, %v292
      %294 = vdwg.mxu0
      %295 = vmatpush.msra.mxu0 0.0
      %296 = vmatpush.msra.mxu0 0.0
      %297 = vmatpush.msra.mxu0 0.0
      %298 = vmatpush.msra.mxu0 0.0
      %299 = vmatpush.msra.mxu0 0.0
      %300 = vmatpush.msra.mxu0 0.0
      %301 = vmatpush.msra.mxu0 0.0
      %302 = vmatpush.msra.mxu0 0.0
      %303 = vmatpush.msra.mxu0 0.0
      %304 = vmatpush.msra.mxu0 0.0
      %305 = vmatpush.msra.mxu0 0.0
      %306 = vmatpush.msra.mxu0 0.0
      %307 = vmatpush.msra.mxu0 0.0
      %308 = vmatpush.msra.mxu0 0.0
      %v309 = vand.u32 %v259, 4294901760
      %v310 = vsub.f32 %v259, %v309
      %v311 = vand.u32 %v310, 4294901760
      %v312 = vsub.f32 %v310, %v311
      %v313 = vand.u32 %v312, 4294901760
      %314 = vmatpush.msra.mxu0 %v313
      %v315 = vand.u32 %v258, 4294901760
      %v316 = vsub.f32 %v258, %v315
      %v317 = vand.u32 %v316, 4294901760
      %v318 = vsub.f32 %v316, %v317
      %v319 = vand.u32 %v318, 4294901760
      %320 = vmatpush.msra.mxu0 %v319
      %v321 = vand.u32 %v266, 4294901760
      %322 = vmatmul.f32.gmra.mxu0 %v321
      %v323 = vpop.f32.mrf.mxu0
      %v324 = vadd.f32 %v293, %v323
      %325 = vdwg.mxu0
      %326 = vmatpush.msra.mxu0 0.0
      %327 = vmatpush.msra.mxu0 0.0
      %328 = vmatpush.msra.mxu0 0.0
      %329 = vmatpush.msra.mxu0 0.0
      %330 = vmatpush.msra.mxu0 0.0
      %331 = vmatpush.msra.mxu0 0.0
      %332 = vmatpush.msra.mxu0 0.0
      %333 = vmatpush.msra.mxu0 0.0
      %334 = vmatpush.msra.mxu0 0.0
      %335 = vmatpush.msra.mxu0 0.0
      %336 = vmatpush.msra.mxu0 0.0
      %337 = vmatpush.msra.mxu0 0.0
      %338 = vmatpush.msra.mxu0 0.0
      %339 = vmatpush.msra.mxu0 0.0
      %v340 = vand.u32 %v259, 4294901760
      %v341 = vsub.f32 %v259, %v340
      %342 = vmatpush.msra.mxu0 %v341
      %v343 = vand.u32 %v258, 4294901760
      %v344 = vsub.f32 %v258, %v343
      %345 = vmatpush.msra.mxu0 %v344
      %v346 = vand.u32 %v266, 4294901760
      %v347 = vsub.f32 %v266, %v346
      %348 = vmatmul.f32.gmra.mxu0 %v347
      %v349 = vpop.f32.mrf.mxu0
      %v350 = vadd.f32 %v324, %v349
      %351 = vdwg.mxu0
      %352 = vmatpush.msra.mxu0 0.0
      %353 = vmatpush.msra.mxu0 0.0
      %354 = vmatpush.msra.mxu0 0.0
      %355 = vmatpush.msra.mxu0 0.0
      %356 = vmatpush.msra.mxu0 0.0
      %357 = vmatpush.msra.mxu0 0.0
      %358 = vmatpush.msra.mxu0 0.0
      %359 = vmatpush.msra.mxu0 0.0
      %360 = vmatpush.msra.mxu0 0.0
      %361 = vmatpush.msra.mxu0 0.0
      %362 = vmatpush.msra.mxu0 0.0
      %363 = vmatpush.msra.mxu0 0.0
      %364 = vmatpush.msra.mxu0 0.0
      %365 = vmatpush.msra.mxu0 0.0
      %v366 = vand.u32 %v259, 4294901760
      %367 = vmatpush.msra.mxu0 %v366
      %v368 = vand.u32 %v258, 4294901760
      %369 = vmatpush.msra.mxu0 %v368
      %v370 = vand.u32 %v266, 4294901760
      %v371 = vsub.f32 %v266, %v370
      %v372 = vand.u32 %v371, 4294901760
      %373 = vmatmul.f32.gmra.mxu0 %v372
      %v374 = vpop.f32.mrf.mxu0
      %v375 = vadd.f32 %v350, %v374
      %376 = vdwg.mxu0
      %377 = vmatpush.msra.mxu0 0.0
      %378 = vmatpush.msra.mxu0 0.0
      %379 = vmatpush.msra.mxu0 0.0
      %380 = vmatpush.msra.mxu0 0.0
      %381 = vmatpush.msra.mxu0 0.0
      %382 = vmatpush.msra.mxu0 0.0
      %383 = vmatpush.msra.mxu0 0.0
      %384 = vmatpush.msra.mxu0 0.0
      %385 = vmatpush.msra.mxu0 0.0
      %386 = vmatpush.msra.mxu0 0.0
      %387 = vmatpush.msra.mxu0 0.0
      %388 = vmatpush.msra.mxu0 0.0
      %389 = vmatpush.msra.mxu0 0.0
      %390 = vmatpush.msra.mxu0 0.0
      %v391 = vand.u32 %v259, 4294901760
      %v392 = vsub.f32 %v259, %v391
      %v393 = vand.u32 %v392, 4294901760
      %394 = vmatpush.msra.mxu0 %v393
      %v395 = vand.u32 %v258, 4294901760
      %v396 = vsub.f32 %v258, %v395
      %v397 = vand.u32 %v396, 4294901760
      %398 = vmatpush.msra.mxu0 %v397
      %v399 = vand.u32 %v266, 4294901760
      %400 = vmatmul.f32.gmra.mxu0 %v399
      %v401 = vpop.f32.mrf.mxu0
      %v402 = vadd.f32 %v375, %v401
      %403 = vdwg.mxu0
      %404 = vmatpush.msra.mxu0 0.0
      %405 = vmatpush.msra.mxu0 0.0
      %406 = vmatpush.msra.mxu0 0.0
      %407 = vmatpush.msra.mxu0 0.0
      %408 = vmatpush.msra.mxu0 0.0
      %409 = vmatpush.msra.mxu0 0.0
      %410 = vmatpush.msra.mxu0 0.0
      %411 = vmatpush.msra.mxu0 0.0
      %412 = vmatpush.msra.mxu0 0.0
      %413 = vmatpush.msra.mxu0 0.0
      %414 = vmatpush.msra.mxu0 0.0
      %415 = vmatpush.msra.mxu0 0.0
      %416 = vmatpush.msra.mxu0 0.0
      %417 = vmatpush.msra.mxu0 0.0
      %v418 = vand.u32 %v259, 4294901760
      %419 = vmatpush.msra.mxu0 %v418
      %v420 = vand.u32 %v258, 4294901760
      %421 = vmatpush.msra.mxu0 %v420
      %v422 = vand.u32 %v266, 4294901760
      %423 = vmatmul.f32.gmra.mxu0 %v422
      %v424 = vpop.f32.mrf.mxu0
      %v425 = vadd.f32 %v402, %v424
      %426 = vdwg.mxu0
      %v427 = vmax.f32 %v425, 0.0
      %v428 = vld [vmem:[%s7] sm:$0xff]
      %v429 = vld [vmem:[%s7 + $0x8] sm:$0xff]
      %v430 = vld [vmem:[%s7 + $0x10] sm:$0xff]
      %v431 = vld [vmem:[%s7 + $0x18] sm:$0xff]
      %v432 = vld [vmem:[%s8] sm:$0x1]
      %v434 = vperm.slane %v432, 0
      %vm436 = vcmask 261120
      %v438 = vsel %vm436, %v427, 0
      %440 = vmatpush.msra.mxu0 0.0
      %441 = vmatpush.msra.mxu0 0.0
      %442 = vmatpush.msra.mxu0 0.0
      %443 = vmatpush.msra.mxu0 0.0
      %444 = vmatpush.msra.mxu0 0.0
      %445 = vmatpush.msra.mxu0 0.0
      %446 = vmatpush.msra.mxu0 0.0
      %447 = vmatpush.msra.mxu0 0.0
      %448 = vmatpush.msra.mxu0 0.0
      %449 = vmatpush.msra.mxu0 0.0
      %450 = vmatpush.msra.mxu0 0.0
      %451 = vmatpush.msra.mxu0 0.0
      %v452 = vand.u32 %v431, 4294901760
      %453 = vmatpush.msra.mxu0 %v452
      %v454 = vand.u32 %v430, 4294901760
      %455 = vmatpush.msra.mxu0 %v454
      %v456 = vand.u32 %v429, 4294901760
      %457 = vmatpush.msra.mxu0 %v456
      %v458 = vand.u32 %v428, 4294901760
      %459 = vmatpush.msra.mxu0 %v458
      %v460 = vand.u32 %v438, 4294901760
      %v461 = vsub.f32 %v438, %v460
      %v462 = vand.u32 %v461, 4294901760
      %v463 = vsub.f32 %v461, %v462
      %v464 = vand.u32 %v463, 4294901760
      %465 = vmatmul.f32.gmra.mxu0 %v464
      %v466 = vpop.f32.mrf.mxu0
      %v467 = vadd.f32 %v434, %v466
      %468 = vdwg.mxu0
      %469 = vmatpush.msra.mxu0 0.0
      %470 = vmatpush.msra.mxu0 0.0
      %471 = vmatpush.msra.mxu0 0.0
      %472 = vmatpush.msra.mxu0 0.0
      %473 = vmatpush.msra.mxu0 0.0
      %474 = vmatpush.msra.mxu0 0.0
      %475 = vmatpush.msra.mxu0 0.0
      %476 = vmatpush.msra.mxu0 0.0
      %477 = vmatpush.msra.mxu0 0.0
      %478 = vmatpush.msra.mxu0 0.0
      %479 = vmatpush.msra.mxu0 0.0
      %480 = vmatpush.msra.mxu0 0.0
      %v481 = vand.u32 %v431, 4294901760
      %v482 = vsub.f32 %v431, %v481
      %v483 = vand.u32 %v482, 4294901760
      %v484 = vsub.f32 %v482, %v483
      %v485 = vand.u32 %v484, 4294901760
      %486 = vmatpush.msra.mxu0 %v485
      %v487 = vand.u32 %v430, 4294901760
      %v488 = vsub.f32 %v430, %v487
      %v489 = vand.u32 %v488, 4294901760
      %v490 = vsub.f32 %v488, %v489
      %v491 = vand.u32 %v490, 4294901760
      %492 = vmatpush.msra.mxu0 %v491
      %v493 = vand.u32 %v429, 4294901760
      %v494 = vsub.f32 %v429, %v493
      %v495 = vand.u32 %v494, 4294901760
      %v496 = vsub.f32 %v494, %v495
      %v497 = vand.u32 %v496, 4294901760
      %498 = vmatpush.msra.mxu0 %v497
      %v499 = vand.u32 %v428, 4294901760
      %v500 = vsub.f32 %v428, %v499
      %v501 = vand.u32 %v500, 4294901760
      %v502 = vsub.f32 %v500, %v501
      %v503 = vand.u32 %v502, 4294901760
      %504 = vmatpush.msra.mxu0 %v503
      %v505 = vand.u32 %v438, 4294901760
      %506 = vmatmul.f32.gmra.mxu0 %v505
      %v507 = vpop.f32.mrf.mxu0
      %v508 = vadd.f32 %v467, %v507
      %509 = vdwg.mxu0
      %510 = vmatpush.msra.mxu0 0.0
      %511 = vmatpush.msra.mxu0 0.0
      %512 = vmatpush.msra.mxu0 0.0
      %513 = vmatpush.msra.mxu0 0.0
      %514 = vmatpush.msra.mxu0 0.0
      %515 = vmatpush.msra.mxu0 0.0
      %516 = vmatpush.msra.mxu0 0.0
      %517 = vmatpush.msra.mxu0 0.0
      %518 = vmatpush.msra.mxu0 0.0
      %519 = vmatpush.msra.mxu0 0.0
      %520 = vmatpush.msra.mxu0 0.0
      %521 = vmatpush.msra.mxu0 0.0
      %v522 = vand.u32 %v431, 4294901760
      %v523 = vsub.f32 %v431, %v522
      %524 = vmatpush.msra.mxu0 %v523
      %v525 = vand.u32 %v430, 4294901760
      %v526 = vsub.f32 %v430, %v525
      %527 = vmatpush.msra.mxu0 %v526
      %v528 = vand.u32 %v429, 4294901760
      %v529 = vsub.f32 %v429, %v528
      %530 = vmatpush.msra.mxu0 %v529
      %v531 = vand.u32 %v428, 4294901760
      %v532 = vsub.f32 %v428, %v531
      %533 = vmatpush.msra.mxu0 %v532
      %v534 = vand.u32 %v438, 4294901760
      %v535 = vsub.f32 %v438, %v534
      %536 = vmatmul.f32.gmra.mxu0 %v535
      %v537 = vpop.f32.mrf.mxu0
      %v538 = vadd.f32 %v508, %v537
      %539 = vdwg.mxu0
      %540 = vmatpush.msra.mxu0 0.0
      %541 = vmatpush.msra.mxu0 0.0
      %542 = vmatpush.msra.mxu0 0.0
      %543 = vmatpush.msra.mxu0 0.0
      %544 = vmatpush.msra.mxu0 0.0
      %545 = vmatpush.msra.mxu0 0.0
      %546 = vmatpush.msra.mxu0 0.0
      %547 = vmatpush.msra.mxu0 0.0
      %548 = vmatpush.msra.mxu0 0.0
      %549 = vmatpush.msra.mxu0 0.0
      %550 = vmatpush.msra.mxu0 0.0
      %551 = vmatpush.msra.mxu0 0.0
      %v552 = vand.u32 %v431, 4294901760
      %553 = vmatpush.msra.mxu0 %v552
      %v554 = vand.u32 %v430, 4294901760
      %555 = vmatpush.msra.mxu0 %v554
      %v556 = vand.u32 %v429, 4294901760
      %557 = vmatpush.msra.mxu0 %v556
      %v558 = vand.u32 %v428, 4294901760
      %559 = vmatpush.msra.mxu0 %v558
      %v560 = vand.u32 %v438, 4294901760
      %v561 = vsub.f32 %v438, %v560
      %v562 = vand.u32 %v561, 4294901760
      %563 = vmatmul.f32.gmra.mxu0 %v562
      %v564 = vpop.f32.mrf.mxu0
      %v565 = vadd.f32 %v538, %v564
      %566 = vdwg.mxu0
      %567 = vmatpush.msra.mxu0 0.0
      %568 = vmatpush.msra.mxu0 0.0
      %569 = vmatpush.msra.mxu0 0.0
      %570 = vmatpush.msra.mxu0 0.0
      %571 = vmatpush.msra.mxu0 0.0
      %572 = vmatpush.msra.mxu0 0.0
      %573 = vmatpush.msra.mxu0 0.0
      %574 = vmatpush.msra.mxu0 0.0
      %575 = vmatpush.msra.mxu0 0.0
      %576 = vmatpush.msra.mxu0 0.0
      %577 = vmatpush.msra.mxu0 0.0
      %578 = vmatpush.msra.mxu0 0.0
      %v579 = vand.u32 %v431, 4294901760
      %v580 = vsub.f32 %v431, %v579
      %v581 = vand.u32 %v580, 4294901760
      %582 = vmatpush.msra.mxu0 %v581
      %v583 = vand.u32 %v430, 4294901760
      %v584 = vsub.f32 %v430, %v583
      %v585 = vand.u32 %v584, 4294901760
      %586 = vmatpush.msra.mxu0 %v585
      %v587 = vand.u32 %v429, 4294901760
      %v588 = vsub.f32 %v429, %v587
      %v589 = vand.u32 %v588, 4294901760
      %590 = vmatpush.msra.mxu0 %v589
      %v591 = vand.u32 %v428, 4294901760
      %v592 = vsub.f32 %v428, %v591
      %v593 = vand.u32 %v592, 4294901760
      %594 = vmatpush.msra.mxu0 %v593
      %v595 = vand.u32 %v438, 4294901760
      %596 = vmatmul.f32.gmra.mxu0 %v595
      %v597 = vpop.f32.mrf.mxu0
      %v598 = vadd.f32 %v565, %v597
      %599 = vdwg.mxu0
      %600 = vmatpush.msra.mxu0 0.0
      %601 = vmatpush.msra.mxu0 0.0
      %602 = vmatpush.msra.mxu0 0.0
      %603 = vmatpush.msra.mxu0 0.0
      %604 = vmatpush.msra.mxu0 0.0
      %605 = vmatpush.msra.mxu0 0.0
      %606 = vmatpush.msra.mxu0 0.0
      %607 = vmatpush.msra.mxu0 0.0
      %608 = vmatpush.msra.mxu0 0.0
      %609 = vmatpush.msra.mxu0 0.0
      %610 = vmatpush.msra.mxu0 0.0
      %611 = vmatpush.msra.mxu0 0.0
      %v612 = vand.u32 %v431, 4294901760
      %613 = vmatpush.msra.mxu0 %v612
      %v614 = vand.u32 %v430, 4294901760
      %615 = vmatpush.msra.mxu0 %v614
      %v616 = vand.u32 %v429, 4294901760
      %617 = vmatpush.msra.mxu0 %v616
      %v618 = vand.u32 %v428, 4294901760
      %619 = vmatpush.msra.mxu0 %v618
      %v620 = vand.u32 %v438, 4294901760
      %621 = vmatmul.f32.gmra.mxu0 %v620
      %v622 = vpop.f32.mrf.mxu0
      %v623 = vadd.f32 %v598, %v622
      %624 = vdwg.mxu0
      %v625 = vmax.f32 %v623, 0.0
      %v626 = vld [vmem:[%s9] sm:$0xff]
      %v627 = vld [vmem:[%s9 + $0x8] sm:$0xff]
      %v628 = vld [vmem:[%s9 + $0x10] sm:$0xff]
      %v629 = vld [vmem:[%s9 + $0x18] sm:$0xff]
      %v630 = vld [vmem:[%s10] sm:$0x1]
      %v632 = vperm.slane %v630, 0
      %v635 = vsel %vm436, %v625, 0
      %637 = vmatpush.msra.mxu0 0.0
      %638 = vmatpush.msra.mxu0 0.0
      %639 = vmatpush.msra.mxu0 0.0
      %640 = vmatpush.msra.mxu0 0.0
      %641 = vmatpush.msra.mxu0 0.0
      %642 = vmatpush.msra.mxu0 0.0
      %643 = vmatpush.msra.mxu0 0.0
      %644 = vmatpush.msra.mxu0 0.0
      %645 = vmatpush.msra.mxu0 0.0
      %646 = vmatpush.msra.mxu0 0.0
      %647 = vmatpush.msra.mxu0 0.0
      %648 = vmatpush.msra.mxu0 0.0
      %v649 = vand.u32 %v629, 4294901760
      %650 = vmatpush.msra.mxu0 %v649
      %v651 = vand.u32 %v628, 4294901760
      %652 = vmatpush.msra.mxu0 %v651
      %v653 = vand.u32 %v627, 4294901760
      %654 = vmatpush.msra.mxu0 %v653
      %v655 = vand.u32 %v626, 4294901760
      %656 = vmatpush.msra.mxu0 %v655
      %v657 = vand.u32 %v635, 4294901760
      %v658 = vsub.f32 %v635, %v657
      %v659 = vand.u32 %v658, 4294901760
      %v660 = vsub.f32 %v658, %v659
      %v661 = vand.u32 %v660, 4294901760
      %662 = vmatmul.f32.gmra.mxu0 %v661
      %v663 = vpop.f32.mrf.mxu0
      %v664 = vadd.f32 %v632, %v663
      %665 = vdwg.mxu0
      %666 = vmatpush.msra.mxu0 0.0
      %667 = vmatpush.msra.mxu0 0.0
      %668 = vmatpush.msra.mxu0 0.0
      %669 = vmatpush.msra.mxu0 0.0
      %670 = vmatpush.msra.mxu0 0.0
      %671 = vmatpush.msra.mxu0 0.0
      %672 = vmatpush.msra.mxu0 0.0
      %673 = vmatpush.msra.mxu0 0.0
      %674 = vmatpush.msra.mxu0 0.0
      %675 = vmatpush.msra.mxu0 0.0
      %676 = vmatpush.msra.mxu0 0.0
      %677 = vmatpush.msra.mxu0 0.0
      %v678 = vand.u32 %v629, 4294901760
      %v679 = vsub.f32 %v629, %v678
      %v680 = vand.u32 %v679, 4294901760
      %v681 = vsub.f32 %v679, %v680
      %v682 = vand.u32 %v681, 4294901760
      %683 = vmatpush.msra.mxu0 %v682
      %v684 = vand.u32 %v628, 4294901760
      %v685 = vsub.f32 %v628, %v684
      %v686 = vand.u32 %v685, 4294901760
      %v687 = vsub.f32 %v685, %v686
      %v688 = vand.u32 %v687, 4294901760
      %689 = vmatpush.msra.mxu0 %v688
      %v690 = vand.u32 %v627, 4294901760
      %v691 = vsub.f32 %v627, %v690
      %v692 = vand.u32 %v691, 4294901760
      %v693 = vsub.f32 %v691, %v692
      %v694 = vand.u32 %v693, 4294901760
      %695 = vmatpush.msra.mxu0 %v694
      %v696 = vand.u32 %v626, 4294901760
      %v697 = vsub.f32 %v626, %v696
      %v698 = vand.u32 %v697, 4294901760
      %v699 = vsub.f32 %v697, %v698
      %v700 = vand.u32 %v699, 4294901760
      %701 = vmatpush.msra.mxu0 %v700
      %v702 = vand.u32 %v635, 4294901760
      %703 = vmatmul.f32.gmra.mxu0 %v702
      %v704 = vpop.f32.mrf.mxu0
      %v705 = vadd.f32 %v664, %v704
      %706 = vdwg.mxu0
      %707 = vmatpush.msra.mxu0 0.0
      %708 = vmatpush.msra.mxu0 0.0
      %709 = vmatpush.msra.mxu0 0.0
      %710 = vmatpush.msra.mxu0 0.0
      %711 = vmatpush.msra.mxu0 0.0
      %712 = vmatpush.msra.mxu0 0.0
      %713 = vmatpush.msra.mxu0 0.0
      %714 = vmatpush.msra.mxu0 0.0
      %715 = vmatpush.msra.mxu0 0.0
      %716 = vmatpush.msra.mxu0 0.0
      %717 = vmatpush.msra.mxu0 0.0
      %718 = vmatpush.msra.mxu0 0.0
      %v719 = vand.u32 %v629, 4294901760
      %v720 = vsub.f32 %v629, %v719
      %721 = vmatpush.msra.mxu0 %v720
      %v722 = vand.u32 %v628, 4294901760
      %v723 = vsub.f32 %v628, %v722
      %724 = vmatpush.msra.mxu0 %v723
      %v725 = vand.u32 %v627, 4294901760
      %v726 = vsub.f32 %v627, %v725
      %727 = vmatpush.msra.mxu0 %v726
      %v728 = vand.u32 %v626, 4294901760
      %v729 = vsub.f32 %v626, %v728
      %730 = vmatpush.msra.mxu0 %v729
      %v731 = vand.u32 %v635, 4294901760
      %v732 = vsub.f32 %v635, %v731
      %733 = vmatmul.f32.gmra.mxu0 %v732
      %v734 = vpop.f32.mrf.mxu0
      %v735 = vadd.f32 %v705, %v734
      %736 = vdwg.mxu0
      %737 = vmatpush.msra.mxu0 0.0
      %738 = vmatpush.msra.mxu0 0.0
      %739 = vmatpush.msra.mxu0 0.0
      %740 = vmatpush.msra.mxu0 0.0
      %741 = vmatpush.msra.mxu0 0.0
      %742 = vmatpush.msra.mxu0 0.0
      %743 = vmatpush.msra.mxu0 0.0
      %744 = vmatpush.msra.mxu0 0.0
      %745 = vmatpush.msra.mxu0 0.0
      %746 = vmatpush.msra.mxu0 0.0
      %747 = vmatpush.msra.mxu0 0.0
      %748 = vmatpush.msra.mxu0 0.0
      %v749 = vand.u32 %v629, 4294901760
      %750 = vmatpush.msra.mxu0 %v749
      %v751 = vand.u32 %v628, 4294901760
      %752 = vmatpush.msra.mxu0 %v751
      %v753 = vand.u32 %v627, 4294901760
      %754 = vmatpush.msra.mxu0 %v753
      %v755 = vand.u32 %v626, 4294901760
      %756 = vmatpush.msra.mxu0 %v755
      %v757 = vand.u32 %v635, 4294901760
      %v758 = vsub.f32 %v635, %v757
      %v759 = vand.u32 %v758, 4294901760
      %760 = vmatmul.f32.gmra.mxu0 %v759
      %v761 = vpop.f32.mrf.mxu0
      %v762 = vadd.f32 %v735, %v761
      %763 = vdwg.mxu0
      %764 = vmatpush.msra.mxu0 0.0
      %765 = vmatpush.msra.mxu0 0.0
      %766 = vmatpush.msra.mxu0 0.0
      %767 = vmatpush.msra.mxu0 0.0
      %768 = vmatpush.msra.mxu0 0.0
      %769 = vmatpush.msra.mxu0 0.0
      %770 = vmatpush.msra.mxu0 0.0
      %771 = vmatpush.msra.mxu0 0.0
      %772 = vmatpush.msra.mxu0 0.0
      %773 = vmatpush.msra.mxu0 0.0
      %774 = vmatpush.msra.mxu0 0.0
      %775 = vmatpush.msra.mxu0 0.0
      %v776 = vand.u32 %v629, 4294901760
      %v777 = vsub.f32 %v629, %v776
      %v778 = vand.u32 %v777, 4294901760
      %779 = vmatpush.msra.mxu0 %v778
      %v780 = vand.u32 %v628, 4294901760
      %v781 = vsub.f32 %v628, %v780
      %v782 = vand.u32 %v781, 4294901760
      %783 = vmatpush.msra.mxu0 %v782
      %v784 = vand.u32 %v627, 4294901760
      %v785 = vsub.f32 %v627, %v784
      %v786 = vand.u32 %v785, 4294901760
      %787 = vmatpush.msra.mxu0 %v786
      %v788 = vand.u32 %v626, 4294901760
      %v789 = vsub.f32 %v626, %v788
      %v790 = vand.u32 %v789, 4294901760
      %791 = vmatpush.msra.mxu0 %v790
      %v792 = vand.u32 %v635, 4294901760
      %793 = vmatmul.f32.gmra.mxu0 %v792
      %v794 = vpop.f32.mrf.mxu0
      %v795 = vadd.f32 %v762, %v794
      %796 = vdwg.mxu0
      %797 = vmatpush.msra.mxu0 0.0
      %798 = vmatpush.msra.mxu0 0.0
      %799 = vmatpush.msra.mxu0 0.0
      %800 = vmatpush.msra.mxu0 0.0
      %801 = vmatpush.msra.mxu0 0.0
      %802 = vmatpush.msra.mxu0 0.0
      %803 = vmatpush.msra.mxu0 0.0
      %804 = vmatpush.msra.mxu0 0.0
      %805 = vmatpush.msra.mxu0 0.0
      %806 = vmatpush.msra.mxu0 0.0
      %807 = vmatpush.msra.mxu0 0.0
      %808 = vmatpush.msra.mxu0 0.0
      %v809 = vand.u32 %v629, 4294901760
      %810 = vmatpush.msra.mxu0 %v809
      %v811 = vand.u32 %v628, 4294901760
      %812 = vmatpush.msra.mxu0 %v811
      %v813 = vand.u32 %v627, 4294901760
      %814 = vmatpush.msra.mxu0 %v813
      %v815 = vand.u32 %v626, 4294901760
      %816 = vmatpush.msra.mxu0 %v815
      %v817 = vand.u32 %v635, 4294901760
      %818 = vmatmul.f32.gmra.mxu0 %v817
      %v819 = vpop.f32.mrf.mxu0
      %v820 = vadd.f32 %v795, %v819
      %821 = vdwg.mxu0
      %vm822 = vcmask 58368
      %823 = vst.msk [vmem:[#allocation6] sm:$0x3] %vm822, %v820
    $region49: #{mlp2_forward.1} parent=1 // pred_fallthru
      _
    // Predicated region
    $region50: #{mlp2_forward.1} parent=1 // pred_check
      _
    $region51: #{mlp2_forward.1} parent=1 // pred_check_branch
      %825 = sbr.rel (0) target = $region53
    $region52: #{mlp2_forward.1} parent=1 // pred_region
      %827 = vsyncadd [#allocation7], 0
      %s829 = sshll.u32 [#allocation6], 4
      %s830 = int_to_ptr.vmem [resolvable:$true] %s829
      %s831 = sshll.u32 %s11, 4
      %s832 = int_to_ptr.hbm [resolvable:$true] %s831
      %834 = dma.vmem_to_hbm [thread:$0]  %s830, 32, %s832, [#allocation7]
    $region53: #{mlp2_forward.1} parent=1 // pred_fallthru
      _
    // Predicated region
    $region54: #{mlp2_forward.1} parent=1 // pred_check
      _
    $region55: #{mlp2_forward.1} parent=1 // pred_check_branch
      %836 = sbr.rel (0) target = $region57
    $region56: #{mlp2_forward.1} parent=1 // pred_region
      %838 = dma.done [#allocation7], 32
    $region57: #{mlp2_forward.1} parent=1 // pred_fallthru
      _
    %839 = vsyncpa [#allocation7], 1

</llo_original>
